<compile_context>
chip_gen: v5e
topology: v5e:2x2
jax: 0.10.0
libtpu: 0.0.40
codegen_flags: <defaults>
</compile_context>

<pallas_src>
import jax
import jax.numpy as jnp
from jax.experimental import pallas as pl
from jax.experimental.pallas import tpu as pltpu

_LANES = 128
_MIB = 1024 * 1024


def _round_up(x, m):
    return ((x + m - 1) // m) * m


def _select_tuning():
    """Generation-aware (block_bytes_per_input, vmem_limit_bytes, num_shards)."""
    kind = ""
    try:
        kind = jax.devices()[0].device_kind.lower()
    except Exception:
        pass
    vmem_cap = None
    try:  # advisory only — never let hardware introspection break the kernel
        info = pltpu.get_tpu_info()
        for name in ("vmem_capacity_bytes", "vmem_bytes", "vmem_size_bytes"):
            val = getattr(info, name, None)
            if val:
                vmem_cap = int(val)
                break
    except Exception:
        pass

    if ("v7" in kind) or ("tpu7" in kind) or ("7x" in kind):
        # v7x: 64 MiB physical VMEM, 3.2 TB/s HBM, 2 TensorCores.  4 MiB/input
        # blocks (reviewer range 4-8 MiB) leave headroom for the widened-f32
        # elementwise intermediates of a block under the 44 MiB scoped limit;
        # per-step DMA ~8 MiB cuts grid-step overhead from ~25% (2 MiB) to ~10%.
        block, limit, shards = 4 * _MIB, 44 * _MIB, 2
    elif ("v6" in kind) or ("v5e" in kind) or ("v5 lite" in kind) or ("v5lite" in kind):
        # v5e/v6e: 128 MiB physical VMEM, single TensorCore -> no shard axis.
        block, limit, shards = 8 * _MIB, 96 * _MIB, 1
    elif ("v4" in kind) or ("v5p" in kind) or ("v5" in kind):
        # Other large-VMEM TPUs (v4 / v5p megacore).
        block, limit, shards = 8 * _MIB, 96 * _MIB, 2
    else:
        # Unknown hardware: conservative, previously-validated settings.
        block, limit, shards = 2 * _MIB, 32 * _MIB, 2
    if vmem_cap:
        limit = min(limit, max(16 * _MIB, vmem_cap - 16 * _MIB))
    return block, limit, shards


def _make_bce_kernel(tile_m, tiles_per_shard, tiles_total, rows_valid,
                     needs_row_mask, needs_block_guard):
    """Accumulates per-(sublane, lane) partial sums of the (positive) clamped
    binary cross-entropy into the resident (8, 128) output block."""

    def kernel(pred_ref, target_ref, out_ref):
        s = pl.program_id(0)   # shard (TensorCore) axis, "parallel"
        i = pl.program_id(1)   # reduction axis, "arbitrary"

        @pl.when(i == 0)
        def _init():
            out_ref[...] = jnp.zeros_like(out_ref)

        linear = s * tiles_per_shard + i  # linear tile index of this block

        def _accumulate():
            p = pred_ref[...].astype(jnp.float32)
            t = target_ref[...].astype(jnp.float32)

            if needs_row_mask:
                # The last block overhangs the (rows, 128) array; its
                # out-of-bounds sublanes hold undefined data.  Mask pred and
                # target BEFORE the logs (never the loss afterwards):
                # (p=1, t=1) contributes exactly 0 because
                #   clamp(log(1)) = 0, clamp(log1p(-1)) = -100,
                #   -100 + 1 * (0 - (-100)) = 0.
                row0 = linear * tile_m
                rid = row0 + jax.lax.broadcasted_iota(jnp.int32, (tile_m, 1), 0)
                valid = rid < rows_valid
                p = jnp.where(valid, p, 1.0)
                t = jnp.where(valid, t, 1.0)

            # torch.nn.BCELoss numerics: log1p(-p) (not log(1-p)), each log
            # term clamped at -100.  Both logs are kept: the single-log1p
            # "hard label" trick is invalid for soft targets and changes
            # small-p numerics.  The leading negation is hoisted to the
            # wrapper (one fewer VALU op/elem where VALU-bound, e.g. bf16/v7x).
            log_p = jnp.maximum(jnp.log(p), -100.0)
            log_1mp = jnp.maximum(jnp.log1p(-p), -100.0)
            contrib = log_1mp + t * (log_p - log_1mp)

            # Sublane-group partial reduce (tile_m, 128) -> (8, 128): pure VPU
            # adds into the vreg-shaped resident accumulator; the tiny final
            # cross-lane reduce is left to XLA in the wrapper.
            out_ref[...] += contrib.reshape(tile_m // 8, 8, _LANES).sum(axis=0)

        if needs_block_guard:
            # tiles_total % num_shards != 0: the surplus grid step maps
            # (clamped) onto the last valid block — skip it so nothing is
            # double counted.  Costs at most one redundant tile of DMA; no
            # array padding, no dummy HBM writes.
            pl.when(linear < tiles_total)(_accumulate)
        else:
            _accumulate()

    return kernel


def bce_loss(pred, target, *, block_bytes=None, vmem_limit_bytes=None,
             num_shards=None, core_parallel=False):
    """Mean binary cross-entropy == torch.nn.BCELoss()(pred, target) (float32)."""
    assert pred.shape == target.shape
    total = pred.size
    assert total > 0

    cfg_block, cfg_limit, cfg_shards = _select_tuning()
    block_bytes = cfg_block if block_bytes is None else block_bytes
    vmem_limit_bytes = cfg_limit if vmem_limit_bytes is None else vmem_limit_bytes
    cfg_shards = cfg_shards if num_shards is None else num_shards

    flat_p = pred.reshape(-1)    # flatten is a free (bitcast) reshape
    flat_t = target.reshape(-1)

    # Lane alignment.  The common case (total % 128 == 0) is completely
    # copy-free.  Only for lane-unaligned totals do we pad <= 127 elements
    # with (pred=1, target=1), whose clamped BCE contribution is exactly 0.
    # TODO(synk): a fully copy-free path for lane-unaligned totals needs 1-D /
    # manual-DMA blocks; not worth the layout risk for a <=127-element tail.
    rem = total % _LANES
    if rem:
        pad = _LANES - rem
        flat_p = jnp.concatenate([flat_p, jnp.ones((pad,), flat_p.dtype)])
        flat_t = jnp.concatenate([flat_t, jnp.ones((pad,), flat_t.dtype)])
    rows = flat_p.size // _LANES
    p2 = flat_p.reshape(rows, _LANES)
    t2 = flat_t.reshape(rows, _LANES)

    # Tile rows: as many 8-row groups as fit the per-input block budget.
    # Counted at max(itemsize, 4) B/elem so the in-kernel f32-widened
    # intermediates of a bf16 block never exceed the VMEM budget.
    itemsize = max(jnp.dtype(flat_p.dtype).itemsize,
                   jnp.dtype(flat_t.dtype).itemsize, 4)
    cap_rows = max(8, (block_bytes // (_LANES * itemsize)) // 8 * 8)
    tile_m = min(cap_rows, _round_up(rows, 8))

    tiles_total = pl.cdiv(rows, tile_m)

    # Shard the tile range across TensorCores.  No rounding of the array —
    # any surplus grid step is clamped + skipped in-kernel.  Skip sharding for
    # tiny inputs where one redundant tile would be a large relative waste.
    shards = max(1, cfg_shards)
    if tiles_total < 2 or (tiles_total % shards != 0 and tiles_total < 4):
        shards = 1
    tiles_per_shard = pl.cdiv(tiles_total, shards)

    needs_block_guard = shards * tiles_per_shard != tiles_total
    needs_row_mask = (rows % tile_m) != 0

    if needs_block_guard:
        in_map = lambda s, i: (jnp.minimum(s * tiles_per_shard + i,
                                           tiles_total - 1), 0)
    else:
        in_map = lambda s, i: (s * tiles_per_shard + i, 0)

    kernel = _make_bce_kernel(tile_m, tiles_per_shard, tiles_total, rows,
                              needs_row_mask, needs_block_guard)

    # Shard axis: "parallel" (known-good on all generations).  If a v7x trace
    # shows the grid running on a single TensorCore, call with
    # core_parallel=True to switch the axis to pltpu.CORE_PARALLEL.
    shard_sem = pltpu.CORE_PARALLEL if (core_parallel and shards > 1) else "parallel"

    partials = pl.pallas_call(
        kernel,
        out_shape=jax.ShapeDtypeStruct((shards * 8, _LANES), jnp.float32),
        grid_spec=pltpu.PrefetchScalarGridSpec(
            num_scalar_prefetch=0,
            grid=(shards, tiles_per_shard),
            # Inputs stream in their native dtype (halves HBM traffic for
            # bf16) and are widened in-kernel.  If an xprof trace on v7x shows
            # exposed DMA between steps, add pipeline_mode=pl.Buffered(3) here
            # (costs one extra VMEM buffer per input).
            in_specs=[
                pl.BlockSpec((tile_m, _LANES), in_map),
                pl.BlockSpec((tile_m, _LANES), in_map),
            ],
            out_specs=pl.BlockSpec((8, _LANES), lambda s, i: (s, 0)),
        ),
        compiler_params=pltpu.CompilerParams(
            dimension_semantics=(shard_sem, "arbitrary"),
            vmem_limit_bytes=vmem_limit_bytes,
        ),
    )(p2, t2)

    # Final tiny cross-shard / cross-lane reduce, negation and mean scaling.
    # (f32 partial sums per (sublane, lane) slot; for >~1e9 elements switch to
    # per-block partials if strict 1e-5 parity with torch is required.)
    return -jnp.sum(partials) / jnp.float32(total)


def _bce_ref(pred, target):
    """Pure-JAX reference with torch BCELoss semantics (log1p + clamp at -100)."""
    p = pred.astype(jnp.float32)
    t = target.astype(jnp.float32)
    return jnp.mean(-(t * jnp.maximum(jnp.log(p), -100.0)
                      + (1.0 - t) * jnp.maximum(jnp.log1p(-p), -100.0)))


if __name__ == "__main__":
    key = jax.random.PRNGKey(0)

    def make_inputs(k, shape, dtype=jnp.float32):
        k1, k2 = jax.random.split(k)
        pred = jax.nn.sigmoid(jax.random.normal(k1, shape, dtype=jnp.float32))
        target = (jax.random.uniform(k2, shape) > 0.5).astype(jnp.float32)
        return pred.astype(dtype), target.astype(dtype)

    k0, k1, k2, k3, k4 = jax.random.split(key, 5)

    # Canonical small example: batch=2, 8x128 per-point probabilities / labels.
    pred, target = make_inputs(k0, (2, 8, 128))
    loss = jax.block_until_ready(bce_loss(pred, target))
    ref = _bce_ref(pred, target)
    assert jnp.allclose(loss, ref, rtol=1e-5, atol=1e-6), (loss, ref)

    # Row-mask path: rows not a multiple of the tile (overhanging last block).
    p, t = make_inputs(k1, (3, 10, 128))
    assert jnp.allclose(bce_loss(p, t), _bce_ref(p, t), rtol=1e-5, atol=1e-6)

    # Lane-unaligned total (rare fallback: <=127-element zero-contribution pad).
    p, t = make_inputs(k2, (5, 77))
    assert jnp.allclose(bce_loss(p, t), _bce_ref(p, t), rtol=1e-5, atol=1e-6)

    # Multi-tile + sharded + clamped/skipped surplus grid step (tiny forced tiles).
    p, t = make_inputs(k3, (40, 128))
    small = bce_loss(p, t, block_bytes=8 * 128 * 4, num_shards=2)
    assert jnp.allclose(small, _bce_ref(p, t), rtol=1e-5, atol=1e-6)

    # bf16 inputs: native-dtype DMA + in-kernel widening.
    p, t = make_inputs(k4, (2, 8, 128), dtype=jnp.bfloat16)
    assert jnp.allclose(bce_loss(p, t), _bce_ref(p, t), rtol=1e-5, atol=1e-5)

    print("KERNEL_OK")
</pallas_src>

<mosaic_0001>
module attributes {stable_mosaic.version = 11 : i64} {
  func.func @kernel(%arg0: i32, %arg1: i32, %arg2: memref<16x128xf32, #tpu.memory_space<vmem>>, %arg3: memref<16x128xf32, #tpu.memory_space<vmem>>, %arg4: memref<8x128xf32, #tpu.memory_space<vmem>>) attributes {dimension_semantics = [#tpu.dimension_semantics<parallel>, #tpu.dimension_semantics<arbitrary>], iteration_bounds = array<i64: 1, 1>, scalar_prefetch = 0 : i64, scratch_operands = 0 : i64, tpu.core_type = #tpu.core_type<tc>, window_params = [{transform_indices = @transform_0, window_bounds = array<i64: 16, 128>}, {transform_indices = @transform_1, window_bounds = array<i64: 16, 128>}, {transform_indices = @transform_2, window_bounds = array<i64: 8, 128>}]} {
    %c0_i32 = arith.constant 0 : i32
    %0 = arith.cmpi eq, %arg1, %c0_i32 : i32
    %1 = arith.extui %0 : i1 to i32
    %c0_i32_0 = arith.constant 0 : i32
    %2 = arith.cmpi ne, %1, %c0_i32_0 : i32
    scf.if %2 {
      %cst_11 = arith.constant 0.000000e+00 : f32
      %21 = vector.broadcast %cst_11 : f32 to vector<8x128xf32>
      %c0_12 = arith.constant 0 : index
      %c0_13 = arith.constant 0 : index
      %22 = vector.load %arg4[%c0_12, %c0_13] : memref<8x128xf32, #tpu.memory_space<vmem>>, vector<8x128xf32>
      tpu.vector_store %arg4[%c0_12, %c0_13], %21 {strides = array<i32>} : memref<8x128xf32, #tpu.memory_space<vmem>>, vector<8x128xf32>,
    } else {
    }
    %c0 = arith.constant 0 : index
    %c0_1 = arith.constant 0 : index
    %3 = vector.load %arg2[%c0, %c0_1] : memref<16x128xf32, #tpu.memory_space<vmem>>, vector<16x128xf32>
    %c0_2 = arith.constant 0 : index
    %c0_3 = arith.constant 0 : index
    %4 = vector.load %arg3[%c0_2, %c0_3] : memref<16x128xf32, #tpu.memory_space<vmem>>, vector<16x128xf32>
    %5 = math.log %3 : vector<16x128xf32>
    %cst = arith.constant -1.000000e+02 : f32
    %6 = vector.broadcast %cst : f32 to vector<16x128xf32>
    %7 = arith.maximumf %5, %6 : vector<16x128xf32>
    %cst_4 = arith.constant 0.000000e+00 : f32
    %8 = vector.broadcast %cst_4 : f32 to vector<16x128xf32>
    %9 = arith.subf %8, %3 : vector<16x128xf32>
    %10 = math.log1p %9 : vector<16x128xf32>
    %cst_5 = arith.constant -1.000000e+02 : f32
    %11 = vector.broadcast %cst_5 : f32 to vector<16x128xf32>
    %12 = arith.maximumf %10, %11 : vector<16x128xf32>
    %13 = arith.subf %7, %12 : vector<16x128xf32>
    %14 = arith.mulf %4, %13 : vector<16x128xf32>
    %15 = arith.addf %12, %14 : vector<16x128xf32>
    %c0_6 = arith.constant 0 : index
    %c0_7 = arith.constant 0 : index
    %16 = vector.load %arg4[%c0_6, %c0_7] : memref<8x128xf32, #tpu.memory_space<vmem>>, vector<8x128xf32>
    %17 = vector.shape_cast %15 : vector<16x128xf32> to vector<2x8x128xf32>
    %cst_8 = arith.constant dense<0.000000e+00> : vector<8x128xf32>
    %18 = vector.multi_reduction <add>, %17, %cst_8 [0] : vector<2x8x128xf32> to vector<8x128xf32>
    %19 = arith.addf %16, %18 : vector<8x128xf32>
    %c0_9 = arith.constant 0 : index
    %c0_10 = arith.constant 0 : index
    %20 = vector.load %arg4[%c0_9, %c0_10] : memref<8x128xf32, #tpu.memory_space<vmem>>, vector<8x128xf32>
    tpu.vector_store %arg4[%c0_9, %c0_10], %19 {strides = array<i32>} : memref<8x128xf32, #tpu.memory_space<vmem>>, vector<8x128xf32>,
    return
  }
  func.func @transform_0(%arg0: i32, %arg1: i32) -> (i32, i32) {
    %c1_i32 = arith.constant 1 : i32
    %0 = arith.muli %arg0, %c1_i32 : i32
    %1 = arith.addi %0, %arg1 : i32
    %c0_i32 = arith.constant 0 : i32
    %c0_i32_0 = arith.constant 0 : i32
    return %1, %c0_i32 : i32, i32
  }
  func.func @transform_1(%arg0: i32, %arg1: i32) -> (i32, i32) {
    %c1_i32 = arith.constant 1 : i32
    %0 = arith.muli %arg0, %c1_i32 : i32
    %1 = arith.addi %0, %arg1 : i32
    %c0_i32 = arith.constant 0 : i32
    %c0_i32_0 = arith.constant 0 : i32
    return %1, %c0_i32 : i32, i32
  }
  func.func @transform_2(%arg0: i32, %arg1: i32) -> (i32, i32) {
    %c0_i32 = arith.constant 0 : i32
    %c0_i32_0 = arith.constant 0 : i32
    return %arg0, %c0_i32 : i32, i32
  }
}

</mosaic_0001>

<llo_original>
// kernel: tpu_custom_call.1
$region0: #{tpu_custom_call.1}
  #allocation0 [shape = 'u32[]', space=smem, size = 0x4, offset = 0x4, fixed_abs, tag = 'smem constant byte address 0x4 - core index']
  #allocation1 [shape = 'u32[72,128]{1,0:T(1,128)}', space=vmem, size = 0x9000, scoped, tag = 'internal scratch']
  %s0 = inlined_call_operand.hbm [shape: f32[16,128], index: 0, kind: input, shape index: {}]
  %s1 = inlined_call_operand.hbm [shape: f32[16,128], index: 1, kind: input, shape index: {}]
  %s2 = inlined_call_operand.hbm [shape: f32[8,128], index: 2, kind: output, shape index: {}]
  %s3 = sld [smem:[#allocation0]]
  $region30: #{tpu_custom_call.1} parent=0
    _
  %s5 = ssub.s32 1, %s3
  %s6 = scalar_select 0, %s5, %s3
  $region1: #{tpu_custom_call.1} parent=0
    #allocation2 [shape = 'u8[8192]{0}', space=vmem, size = 0x2000, scoped, tag = 'input window, operand 0, single buffered']
    #allocation3 [shape = 's32[1]{0}', space=sflag, size = 0x4, scoped, tag = 'scoped memory for tpu_custom_call.1']
    #allocation4 [shape = 's32[1]{0}', space=sflag, size = 0x4, scoped, tag = 'scoped memory for tpu_custom_call.1']
    #allocation5 [shape = 'u8[8192]{0}', space=vmem, size = 0x2000, scoped, tag = 'input window, operand 1, single buffered']
    #allocation6 [shape = 's32[1]{0}', space=sflag, size = 0x4, scoped, tag = 'scoped memory for tpu_custom_call.1']
    #allocation7 [shape = 'u8[4096]{0}', space=vmem, size = 0x1000, scoped, tag = 'output window, operand 0, single buffered']
    %7 = vsyncpa [#allocation3], 0
    %8 = vsyncpa [#allocation6], 0
    %9 = vsyncpa [#allocation4], 0
    // Predicated region
    $region2: #{tpu_custom_call.1} parent=1 // pred_check
      _
    $region3: #{tpu_custom_call.1} parent=1 // pred_check_branch
      %11 = sbr.rel (0) target = $region5
    $region4: #{tpu_custom_call.1} parent=1 // pred_region
      %s12 = sadd.s32 0, 0
      %s13 = smul.u32 2, %s12
      %15 = vsyncadd [#allocation3], 0
      %s16 = smul.addr %s13, 8
      %s17 = scalar_lea.hbm %s0, %s16
      %s18 = sshll.u32 %s17, 4
      %s19 = int_to_ptr.hbm [resolvable:$true] %s18
      %s20 = sshll.u32 [#allocation2], 4
      %s21 = int_to_ptr.vmem [resolvable:$true] %s20
      %26 = dma.hbm_to_vmem [thread:$0]  %s19, 256, %s21, [#allocation3], 128, 128, 8
    $region5: #{tpu_custom_call.1} parent=1 // pred_fallthru
      _
    // Predicated region
    $region6: #{tpu_custom_call.1} parent=1 // pred_check
      _
    $region7: #{tpu_custom_call.1} parent=1 // pred_check_branch
      %28 = sbr.rel (0) target = $region9
    $region8: #{tpu_custom_call.1} parent=1 // pred_region
      %s29 = sadd.s32 0, 0
      %s30 = smul.u32 2, %s29
      %32 = vsyncadd [#allocation6], 0
      %s33 = smul.addr %s30, 8
      %s34 = scalar_lea.hbm %s1, %s33
      %s35 = sshll.u32 %s34, 4
      %s36 = int_to_ptr.hbm [resolvable:$true] %s35
      %s37 = sshll.u32 [#allocation5], 4
      %s38 = int_to_ptr.vmem [resolvable:$true] %s37
      %43 = dma.hbm_to_vmem [thread:$0]  %s36, 256, %s38, [#allocation6], 128, 128, 8
    $region9: #{tpu_custom_call.1} parent=1 // pred_fallthru
      _
    // Predicated region
    $region10: #{tpu_custom_call.1} parent=1 // pred_check
      _
    $region11: #{tpu_custom_call.1} parent=1 // pred_check_branch
      %45 = sbr.rel (0) target = $region13
    $region12: #{tpu_custom_call.1} parent=1 // pred_region
      %47 = dma.done [#allocation3], 256
    $region13: #{tpu_custom_call.1} parent=1 // pred_fallthru
      _
    // Predicated region
    $region14: #{tpu_custom_call.1} parent=1 // pred_check
      _
    $region15: #{tpu_custom_call.1} parent=1 // pred_check_branch
      %49 = sbr.rel (0) target = $region17
    $region16: #{tpu_custom_call.1} parent=1 // pred_region
      %51 = dma.done [#allocation6], 256
    $region17: #{tpu_custom_call.1} parent=1 // pred_fallthru
      _
    %s52 = sadd.s32 0, 0
    %s53 = smul.u32 2, %s52
    %s54 = sadd.s32 0, 0
    %s55 = smul.u32 2, %s54
    %p56 = scmp.eq.s32.totalorder 0, 0
    // Predicated region
    $region18: #{tpu_custom_call.1} parent=1 // pred_check
      %p57 = pneg %p56
    $region19: #{tpu_custom_call.1} parent=1 // pred_check_branch
      %59 = sbr.rel (%p57) target = $region21
    $region20: #{tpu_custom_call.1} parent=1 // pred_region
      %60 = vst [vmem:[#allocation7] sm:$0xff] 0.0
    $region21: #{tpu_custom_call.1} parent=1 // pred_fallthru
      _
    %v61 = vld [vmem:[#allocation2] sm:$0xff]
    %v62 = vld [vmem:[#allocation2 + $0x8] sm:$0xff]
    %v63 = vld [vmem:[#allocation5] sm:$0xff]
    %v64 = vld [vmem:[#allocation5 + $0x8] sm:$0xff]
    %v65 = vlog2.pop %v61
    %v66 = vmul.f32 %v65, 0.6931472
    %v67 = vlog2.pop %v62
    %v68 = vmul.f32 %v67, 0.6931472
    %v69 = vmax.f32 %v66, -100.0
    %v70 = vmax.f32 %v68, -100.0
    %v71 = vsub.f32 0.0, %v61
    %v72 = vsub.f32 0.0, %v62
    %v73 = vadd.f32 %v71, 1.0
    %v74 = vlog2.pop %v73
    %v75 = vmul.f32 %v74, 0.6931472
    %v76 = vmul.f32 -0.5, %v71
    %v77 = vadd.f32 %v76, 1.0
    %v78 = vmul.f32 %v77, %v71
    %v79 = vand.u32 2147483647, %v71
    %vm80 = vcmp.lt.f32.partialorder %v79, 0.0004427343
    %v81 = vsel %vm80, %v78, %v75
    %v82 = vadd.f32 %v72, 1.0
    %v83 = vlog2.pop %v82
    %v84 = vmul.f32 %v83, 0.6931472
    %v85 = vmul.f32 -0.5, %v72
    %v86 = vadd.f32 %v85, 1.0
    %v87 = vmul.f32 %v86, %v72
    %v88 = vand.u32 2147483647, %v72
    %vm89 = vcmp.lt.f32.partialorder %v88, 0.0004427343
    %v90 = vsel %vm89, %v87, %v84
    %v91 = vmax.f32 %v81, -100.0
    %v92 = vmax.f32 %v90, -100.0
    %v93 = vsub.f32 %v69, %v91
    %v94 = vsub.f32 %v70, %v92
    %v95 = vmul.f32 %v63, %v93
    %v96 = vmul.f32 %v64, %v94
    %v97 = vadd.f32 %v91, %v95
    %v98 = vadd.f32 %v92, %v96
    %v99 = vld [vmem:[#allocation7] sm:$0xff]
    %v100 = vadd.f32 %v97, %v98
    %v101 = vadd.f32 %v99, %v100
    %102 = vst [vmem:[#allocation7] sm:$0xff] %v101
    // Predicated region
    $region22: #{tpu_custom_call.1} parent=1 // pred_check
      _
    $region23: #{tpu_custom_call.1} parent=1 // pred_check_branch
      %104 = sbr.rel (0) target = $region25
    $region24: #{tpu_custom_call.1} parent=1 // pred_region
      %106 = vsyncadd [#allocation4], 0
      %s108 = sshll.u32 [#allocation7], 4
      %s109 = int_to_ptr.vmem [resolvable:$true] %s108
      %s110 = sshll.u32 %s2, 4
      %s111 = int_to_ptr.hbm [resolvable:$true] %s110
      %113 = dma.vmem_to_hbm [thread:$0]  %s109, 128, %s111, [#allocation4]
    $region25: #{tpu_custom_call.1} parent=1 // pred_fallthru
      _
    // Predicated region
    $region26: #{tpu_custom_call.1} parent=1 // pred_check
      _
    $region27: #{tpu_custom_call.1} parent=1 // pred_check_branch
      %115 = sbr.rel (0) target = $region29
    $region28: #{tpu_custom_call.1} parent=1 // pred_region
      %117 = dma.done [#allocation4], 128
    $region29: #{tpu_custom_call.1} parent=1 // pred_fallthru
      _
    %118 = vsyncpa [#allocation3], 1
    %119 = vsyncpa [#allocation6], 1
    %120 = vsyncpa [#allocation4], 1

</llo_original>
